<compile_context>
chip_gen: v6e
topology: v6e:2x2x1
jax: 0.10.0
libtpu: 0.0.40
codegen_flags: <defaults>
</compile_context>

<pallas_src>
import functools

import jax
import jax.numpy as jnp
from jax import lax
from jax.experimental import pallas as pl
from jax.experimental.pallas import tpu as pltpu

BN_EPS = 1e-3


def _conv_tile(x_ref, xh_ref, w_ref, H, Cin):
    """Transposed-conv for one row tile, lane-packed as (tile_rows, W*4*Cout).

    x_ref : (tile_rows, W*Cin)  rows are (n, i) image rows, lanes are (j, c).
    xh_ref: (halo_rows, W*Cin)  row 0 is the image row following this tile.
    w_ref : (4*W*Cin, W*4*Cout) block-diagonal weight; row blocks are the 4 input
            shifts (none / j+1 / i+1 / i+1,j+1), column lanes are (j, subpixel, co).
    """
    f32 = jnp.float32
    x = x_ref[...]                                      # (TR, W*Cin)
    tr = x.shape[0]

    # Next image row (i+1) for every row of the tile; last row uses the halo row.
    halo = xh_ref[0:1, :]
    x_dn = jnp.concatenate([x[1:, :], halo], axis=0)

    # Mask rows whose (i+1) neighbour falls outside the image (i == H-1).
    row = tr * pl.program_id(0) + lax.broadcasted_iota(jnp.int32, (tr, 1), 0)
    h_ok = (row % H) != (H - 1)
    x_dn = jnp.where(h_ok, x_dn, 0.0)

    # Next column (j+1): shift lanes left by Cin, zero-fill the last pixel (j=W-1).
    zc = jnp.zeros((tr, Cin), f32)
    x_rt = jnp.concatenate([x[:, Cin:], zc], axis=1)     # x[i,   j+1]
    x_dr = jnp.concatenate([x_dn[:, Cin:], zc], axis=1)  # x[i+1, j+1]

    # One fused MXU matmul (K = 4*W*Cin) instead of 4 small dots + 3 VPU adds.
    xcat = jnp.concatenate([x, x_rt, x_dn, x_dr], axis=1)
    return jnp.dot(xcat, w_ref[...], preferred_element_type=f32)


def _stats_kernel(H, Cin, x_ref, xh_ref, w_ref, stats_ref):
    """Pass 1: per-tile per-lane mean and centered M2 (Chan-mergeable, no E[x^2]-m^2)."""
    conv = _conv_tile(x_ref, xh_ref, w_ref, H, Cin)
    inv_rows = 1.0 / conv.shape[0]
    mu = jnp.sum(conv, axis=0, keepdims=True) * inv_rows
    d = conv - mu
    stats_ref[0:1, :] = mu
    stats_ref[1:2, :] = jnp.sum(d * d, axis=0, keepdims=True)


def _norm_kernel(H, Cin, x_ref, xh_ref, w_ref, scale_ref, shift_ref, o_ref):
    """Pass 2: recompute conv tile, fused BN scale/shift + ReLU, lane-dense store."""
    conv = _conv_tile(x_ref, xh_ref, w_ref, H, Cin)
    o_ref[...] = jnp.maximum(conv * scale_ref[...] + shift_ref[...], 0.0)
    # TODO(synk): if a profile shows exposed output writeback after enlarging tiles,
    # add pipeline_mode=pl.Buffered(3) on the pass-2 out spec (watch v7x VMEM).


def _pick_tile_rows(R, bytes_per_row, weight_bytes,
                    vmem_budget_bytes=8 * 1024 * 1024):
    """Rows per tile: largest multiple-of-8 divisor of R that fits the VMEM budget and
    leaves >= 2 grid steps (preferably an even count, so both v7x TCs stay busy)."""
    if R % 8 != 0:
        return R                                   # tiny/odd N*H: single full tile
    budget = max(vmem_budget_bytes - weight_bytes, 64 * 1024)
    max_rows = max(8, budget // max(bytes_per_row, 1))
    cands = [tr for tr in range(8, R + 1, 8) if R % tr == 0 and tr <= max_rows]
    if not cands:
        return 8
    multi = [tr for tr in cands if R // tr >= 2]
    if multi:
        even = [tr for tr in multi if (R // tr) % 2 == 0]
        return max(even) if even else max(multi)
    return max(cands)


def upsampler_block(x_nchw, w_t, b, gamma, beta, *, tile_rows=None):
    """x_nchw: (N, Cin, H, W); w_t: ConvTranspose2d weight, PyTorch layout (Cin, Cout, 3, 3).

    `b` (the conv bias) is accepted for parameter parity but unused: it cancels
    exactly against the training-mode batch mean inside BatchNorm.
    """
    del b
    N, Cin, H, W = x_nchw.shape
    Cout = w_t.shape[1]
    R = N * H                       # rows = (n, i) image rows
    L_in = W * Cin                  # input lanes  = (j, c)
    C4 = 4 * Cout                   # 4 sub-pixel groups (ee, eo, oe, oo) x Cout
    L_out = W * C4                  # output lanes = (j, subpixel, co)
    f32 = jnp.float32

    # ---- host-side layout glue (one transpose in) ----------------------------------
    x2 = jnp.transpose(x_nchw, (0, 2, 3, 1)).reshape(R, L_in).astype(f32)

    # ---- weights: sub-pixel decomposition of ConvTranspose2d(k=3, s=2, p=1, op=1) ---
    #   out[2i,2j]     = x[i,j]@W11
    #   out[2i,2j+1]   = x[i,j]@W12 + x[i,j+1]@W10
    #   out[2i+1,2j]   = x[i,j]@W21 + x[i+1,j]@W01
    #   out[2i+1,2j+1] = x[i,j]@W22 + x[i,j+1]@W20 + x[i+1,j]@W02 + x[i+1,j+1]@W00
    w = w_t.astype(f32)
    tap = lambda kh, kw: w[:, :, kh, kw]                       # (Cin, Cout)
    z = jnp.zeros((Cin, Cout), f32)
    w_a = jnp.concatenate([tap(1, 1), tap(1, 2), tap(2, 1), tap(2, 2)], axis=1)  # x[i, j]
    w_b = jnp.concatenate([z,         tap(1, 0), z,         tap(2, 0)], axis=1)  # x[i, j+1]
    w_c = jnp.concatenate([z,         z,         tap(0, 1), tap(0, 2)], axis=1)  # x[i+1, j]
    w_d = jnp.concatenate([z,         z,         z,         tap(0, 0)], axis=1)  # x[i+1, j+1]
    # Fold the image width into the lane axis: block-diagonal over j, then stack the
    # 4 shift blocks along K -> single (4*W*Cin, W*4*Cout) matmul operand.
    eye_w = jnp.eye(W, dtype=f32)
    w_big = jnp.concatenate([jnp.kron(eye_w, m) for m in (w_a, w_b, w_c, w_d)], axis=0)

    # ---- tile selection -------------------------------------------------------------
    lane_pad = lambda c: ((c + 127) // 128) * 128
    w_bytes = 2 * (4 * L_in) * lane_pad(L_out) * 4              # double-buffered weight
    bytes_per_row = 4 * (2 * lane_pad(L_in) + 2 * lane_pad(L_out)      # x / out (2x buf)
                         + lane_pad(4 * L_in) + lane_pad(L_out)        # xcat + conv temps
                         + 3 * lane_pad(L_in))                         # shifted copies
    if tile_rows is None:
        tile_rows = _pick_tile_rows(R, bytes_per_row, w_bytes)
    assert R % tile_rows == 0
    assert tile_rows % 8 == 0 or tile_rows == R
    num_tiles = R // tile_rows

    # ---- specs ------------------------------------------------------------------
    x_spec = pl.BlockSpec((tile_rows, L_in), lambda t: (t, 0))
    if tile_rows % 8 == 0:
        # 1-row halo, fetched as an aligned 8-row block; wraps to block 0 on the last
        # tile, where the halo row is masked anyway (last image row).
        step, nblk = tile_rows // 8, R // 8
        xh_spec = pl.BlockSpec((8, L_in), lambda t: (((t + 1) * step) % nblk, 0))
    else:                                   # single full-array tile
        xh_spec = pl.BlockSpec((R, L_in), lambda t: (0, 0))
    w_spec = pl.BlockSpec((4 * L_in, L_out), lambda t: (0, 0))

    cparams = pltpu.CompilerParams(
        dimension_semantics=("parallel",),       # disjoint row tiles -> megacore-friendly
        vmem_limit_bytes=48 * 1024 * 1024)       # <= v7x-safe, ample for v5e/v6e

    # ---- pass 1: per-tile centered statistics ---------------------------------------
    stats = pl.pallas_call(
        functools.partial(_stats_kernel, H, Cin),
        out_shape=jax.ShapeDtypeStruct((num_tiles, 2, L_out), f32),
        grid=(num_tiles,),
        in_specs=[x_spec, xh_spec, w_spec],
        out_specs=pl.BlockSpec((None, 2, L_out), lambda t: (t, 0, 0)),
        compiler_params=cparams,
    )(x2, x2, w_big)

    # ---- tiny host-side finalize: Chan merge -> per-channel mean/var -> scale/shift --
    count = jnp.float32(4 * N * H * W)                           # N * 2H * 2W per channel
    mu_t = stats[:, 0, :].reshape(num_tiles, W, 4, Cout)         # equal-sized groups
    m2_t = stats[:, 1, :].reshape(num_tiles, W, 4, Cout)
    mean_c = jnp.mean(mu_t, axis=(0, 1, 2))
    m2_c = (jnp.sum(m2_t, axis=(0, 1, 2))
            + tile_rows * jnp.sum((mu_t - mean_c) ** 2, axis=(0, 1, 2)))
    var_c = jnp.maximum(m2_c / count, 0.0)
    scale_c = gamma.astype(f32) * lax.rsqrt(var_c + BN_EPS)
    shift_c = beta.astype(f32) - mean_c * scale_c
    scale = jnp.tile(scale_c, 4 * W).reshape(1, L_out)           # per-channel, co fastest
    shift = jnp.tile(shift_c, 4 * W).reshape(1, L_out)

    # ---- pass 2: recompute conv tile, normalize, ReLU (lane-dense output) -----------
    out_packed = pl.pallas_call(
        functools.partial(_norm_kernel, H, Cin),
        out_shape=jax.ShapeDtypeStruct((R, L_out), f32),
        grid=(num_tiles,),
        in_specs=[x_spec, xh_spec, w_spec,
                  pl.BlockSpec((1, L_out), lambda t: (0, 0)),
                  pl.BlockSpec((1, L_out), lambda t: (0, 0))],
        out_specs=pl.BlockSpec((tile_rows, L_out), lambda t: (t, 0)),
        compiler_params=cparams,
    )(x2, x2, w_big, scale, shift)

    # ---- single host-side transpose back to NCHW (layout glue only) -----------------
    out = out_packed.reshape(N, H, W, 2, 2, Cout)                # (n, i, j, di, dj, co)
    return out.transpose(0, 5, 1, 3, 2, 4).reshape(N, Cout, 2 * H, 2 * W)


def reference(x_nchw, w_t, b, gamma, beta):
    """Pure-JAX reference mirroring the PyTorch forward (keeps the conv bias)."""
    w_conv = jnp.flip(jnp.transpose(w_t, (1, 0, 2, 3)), axis=(2, 3))  # OIHW, flipped
    conv = lax.conv_general_dilated(
        x_nchw, w_conv, window_strides=(1, 1), padding=((1, 2), (1, 2)),
        lhs_dilation=(2, 2), rhs_dilation=(1, 1),
        dimension_numbers=("NCHW", "OIHW", "NCHW"))
    conv = conv + b[None, :, None, None]
    mean = jnp.mean(conv, axis=(0, 2, 3), keepdims=True)
    var = jnp.mean((conv - mean) ** 2, axis=(0, 2, 3), keepdims=True)
    y = ((conv - mean) * lax.rsqrt(var + BN_EPS)
         * gamma[None, :, None, None] + beta[None, :, None, None])
    return jnp.maximum(y, 0.0)


if __name__ == "__main__":
    key = jax.random.PRNGKey(0)
    kx, kw, kb, kg, kbe = jax.random.split(key, 5)

    N, Cin, Cout, H, W = 2, 4, 8, 16, 16
    x = jax.random.normal(kx, (N, Cin, H, W), jnp.float32)
    w_t = 0.2 * jax.random.normal(kw, (Cin, Cout, 3, 3), jnp.float32)
    b = 0.1 * jax.random.normal(kb, (Cout,), jnp.float32)
    gamma = 1.0 + 0.1 * jax.random.normal(kg, (Cout,), jnp.float32)
    beta = 0.1 * jax.random.normal(kbe, (Cout,), jnp.float32)

    ref = jax.block_until_ready(reference(x, w_t, b, gamma, beta))

    # tile_rows=8 forces sub-image row tiles (half an image per grid step): exercises
    # the halo-row path, a 4-step parallel grid and the Chan stats merge.
    out = jax.block_until_ready(upsampler_block(x, w_t, b, gamma, beta, tile_rows=8))
    assert out.shape == (N, Cout, 2 * H, 2 * W), out.shape
    assert jnp.allclose(out, ref, atol=1e-4, rtol=1e-4), float(jnp.max(jnp.abs(out - ref)))

    # Default heuristic path (picks 16 rows -> 2 even grid steps here).
    out2 = jax.block_until_ready(upsampler_block(x, w_t, b, gamma, beta))
    assert jnp.allclose(out2, ref, atol=1e-4, rtol=1e-4), float(jnp.max(jnp.abs(out2 - ref)))

    print("KERNEL_OK")
</pallas_src>

<mosaic_0001>
module attributes {stable_mosaic.version = 11 : i64} {
  func.func @_stats_kernel(%arg0: i32, %arg1: memref<8x64xf32, #tpu.memory_space<vmem>>, %arg2: memref<8x64xf32, #tpu.memory_space<vmem>>, %arg3: memref<256x512xf32, #tpu.memory_space<vmem>>, %arg4: memref<1x2x512xf32, #tpu.memory_space<vmem>>) attributes {dimension_semantics = [#tpu.dimension_semantics<parallel>], iteration_bounds = array<i64: 4>, scalar_prefetch = 0 : i64, scratch_operands = 0 : i64, tpu.core_type = #tpu.core_type<tc>, window_params = [{transform_indices = @transform_0, window_bounds = array<i64: 8, 64>}, {transform_indices = @transform_1, window_bounds = array<i64: 8, 64>}, {pipeline_mode = #tpu.pipeline_mode<synchronous>, transform_indices = @transform_2, window_bounds = array<i64: 256, 512>}, {transform_indices = @transform_3, window_bounds = array<i64: 1, 2, 512>}]} {
    %c0 = arith.constant 0 : index
    %c0_0 = arith.constant 0 : index
    %0 = vector.load %arg1[%c0, %c0_0] : memref<8x64xf32, #tpu.memory_space<vmem>>, vector<8x64xf32>
    %c0_1 = arith.constant 0 : index
    %c0_2 = arith.constant 0 : index
    %1 = vector.load %arg2[%c0_1, %c0_2] : memref<8x64xf32, #tpu.memory_space<vmem>>, vector<1x64xf32>
    %2 = vector.extract_strided_slice %0 {offsets = [1, 0], sizes = [7, 64], strides = [1, 1]} : vector<8x64xf32> to vector<7x64xf32>
    %3 = tpu.concatenate %2, %1 in 0 : vector<7x64xf32>, vector<1x64xf32> -> vector<8x64xf32>
    %c8_i32 = arith.constant 8 : i32
    %4 = arith.muli %c8_i32, %arg0 : i32
    %5 = tpu.iota {dimensions = array<i32: 0>} : vector<8x1xi32>
    %6 = vector.broadcast %4 : i32 to vector<8x1xi32>
    %7 = arith.addi %6, %5 : vector<8x1xi32>
    %c16_i32 = arith.constant 16 : i32
    %c0_i32 = arith.constant 0 : i32
    %8 = arith.cmpi eq, %c16_i32, %c0_i32 : i32
    %c1_i32 = arith.constant 1 : i32
    %9 = arith.select %8, %c1_i32, %c16_i32 : i32
    %10 = vector.broadcast %9 : i32 to vector<8x1xi32>
    %11 = arith.remsi %7, %10 : vector<8x1xi32>
    %c0_i32_3 = arith.constant 0 : i32
    %12 = vector.broadcast %c0_i32_3 : i32 to vector<8x1xi32>
    %13 = arith.cmpi ne, %11, %12 : vector<8x1xi32>
    %c0_i32_4 = arith.constant 0 : i32
    %14 = vector.broadcast %c0_i32_4 : i32 to vector<8x1xi32>
    %15 = arith.cmpi slt, %11, %14 : vector<8x1xi32>
    %c0_i32_5 = arith.constant 0 : i32
    %16 = arith.cmpi slt, %9, %c0_i32_5 : i32
    %17 = vector.broadcast %16 : i1 to vector<8x1xi1>
    %18 = vector.broadcast %17 : vector<8x1xi1> to vector<8x1xi1>
    %19 = arith.xori %15, %18 : vector<8x1xi1>
    %20 = arith.andi %19, %13 : vector<8x1xi1>
    %21 = vector.broadcast %9 : i32 to vector<8x1xi32>
    %22 = arith.addi %11, %21 : vector<8x1xi32>
    %23 = arith.select %20, %22, %11 : vector<8x1xi1>, vector<8x1xi32>
    %c15_i32 = arith.constant 15 : i32
    %24 = vector.broadcast %c15_i32 : i32 to vector<8x1xi32>
    %25 = arith.cmpi ne, %23, %24 : vector<8x1xi32>
    %cst = arith.constant 0.000000e+00 : f32
    %26 = vector.shape_cast %25 : vector<8x1xi1> to vector<8x1xi1>
    %27 = vector.broadcast %26 : vector<8x1xi1> to vector<8x64xi1>
    %28 = vector.broadcast %cst : f32 to vector<8x64xf32>
    %29 = arith.select %27, %3, %28 : vector<8x64xi1>, vector<8x64xf32>
    %cst_6 = arith.constant 0.000000e+00 : f32
    %30 = vector.broadcast %cst_6 : f32 to vector<8x4xf32>
    %31 = vector.extract_strided_slice %0 {offsets = [0, 4], sizes = [8, 60], strides = [1, 1]} : vector<8x64xf32> to vector<8x60xf32>
    %32 = tpu.concatenate %31, %30 in 1 : vector<8x60xf32>, vector<8x4xf32> -> vector<8x64xf32>
    %33 = vector.extract_strided_slice %29 {offsets = [0, 4], sizes = [8, 60], strides = [1, 1]} : vector<8x64xf32> to vector<8x60xf32>
    %34 = tpu.concatenate %33, %30 in 1 : vector<8x60xf32>, vector<8x4xf32> -> vector<8x64xf32>
    %35 = tpu.concatenate %0, %32, %29, %34 in 1 : vector<8x64xf32>, vector<8x64xf32>, vector<8x64xf32>, vector<8x64xf32> -> vector<8x256xf32>
    %c0_7 = arith.constant 0 : index
    %c0_8 = arith.constant 0 : index
    %36 = vector.load %arg3[%c0_7, %c0_8] : memref<256x512xf32, #tpu.memory_space<vmem>>, vector<256x512xf32>
    %cst_9 = arith.constant dense<0.000000e+00> : vector<8x512xf32>
    %37 = tpu.matmul %35, %36, %cst_9 {dimension_numbers = #tpu.dot_dimension_numbers<[1], [0], [0], [1], [0, 0, 1, 1], [], []>} : vector<8x256xf32>, vector<256x512xf32>, vector<8x512xf32> -> vector<8x512xf32>
    %cst_10 = arith.constant dense<0.000000e+00> : vector<512xf32>
    %38 = vector.multi_reduction <add>, %37, %cst_10 [0] : vector<8x512xf32> to vector<512xf32>
    %39 = vector.shape_cast %38 : vector<512xf32> to vector<1x512xf32>
    %cst_11 = arith.constant 1.250000e-01 : f32
    %40 = vector.broadcast %cst_11 : f32 to vector<1x512xf32>
    %41 = arith.mulf %39, %40 : vector<1x512xf32>
    %42 = vector.broadcast %41 : vector<1x512xf32> to vector<8x512xf32>
    %43 = arith.subf %37, %42 : vector<8x512xf32>
    %c0_12 = arith.constant 0 : index
    %c0_13 = arith.constant 0 : index
    %c0_14 = arith.constant 0 : index
    %44 = vector.load %arg4[%c0_12, %c0_13, %c0_14] : memref<1x2x512xf32, #tpu.memory_space<vmem>>, vector<1x1x512xf32>
    %45 = vector.shape_cast %44 : vector<1x1x512xf32> to vector<1x512xf32>
    %46 = vector.shape_cast %41 : vector<1x512xf32> to vector<1x1x512xf32>
    tpu.vector_store %arg4[%c0_12, %c0_13, %c0_14], %46 {strides = array<i32>} : memref<1x2x512xf32, #tpu.memory_space<vmem>>, vector<1x1x512xf32>,
    %47 = arith.mulf %43, %43 : vector<8x512xf32>
    %cst_15 = arith.constant dense<0.000000e+00> : vector<512xf32>
    %48 = vector.multi_reduction <add>, %47, %cst_15 [0] : vector<8x512xf32> to vector<512xf32>
    %49 = vector.shape_cast %48 : vector<512xf32> to vector<1x512xf32>
    %c0_16 = arith.constant 0 : index
    %c1 = arith.constant 1 : index
    %c0_17 = arith.constant 0 : index
    %50 = vector.load %arg4[%c0_16, %c1, %c0_17] : memref<1x2x512xf32, #tpu.memory_space<vmem>>, vector<1x1x512xf32>
    %51 = vector.shape_cast %50 : vector<1x1x512xf32> to vector<1x512xf32>
    %52 = vector.shape_cast %49 : vector<1x512xf32> to vector<1x1x512xf32>
    tpu.vector_store %arg4[%c0_16, %c1, %c0_17], %52 {strides = array<i32>} : memref<1x2x512xf32, #tpu.memory_space<vmem>>, vector<1x1x512xf32>,
    return
  }
  func.func @transform_0(%arg0: i32) -> (i32, i32) {
    %c0_i32 = arith.constant 0 : i32
    %c0_i32_0 = arith.constant 0 : i32
    return %arg0, %c0_i32 : i32, i32
  }
  func.func @transform_1(%arg0: i32) -> (i32, i32) {
    %c1_i32 = arith.constant 1 : i32
    %0 = arith.addi %arg0, %c1_i32 : i32
    %c1_i32_0 = arith.constant 1 : i32
    %1 = arith.muli %0, %c1_i32_0 : i32
    %c4_i32 = arith.constant 4 : i32
    %c0_i32 = arith.constant 0 : i32
    %2 = arith.cmpi eq, %c4_i32, %c0_i32 : i32
    %c1_i32_1 = arith.constant 1 : i32
    %3 = arith.select %2, %c1_i32_1, %c4_i32 : i32
    %4 = arith.remsi %1, %3 : i32
    %c0_i32_2 = arith.constant 0 : i32
    %5 = arith.cmpi ne, %4, %c0_i32_2 : i32
    %c0_i32_3 = arith.constant 0 : i32
    %6 = arith.cmpi slt, %4, %c0_i32_3 : i32
    %c0_i32_4 = arith.constant 0 : i32
    %7 = arith.cmpi slt, %3, %c0_i32_4 : i32
    %8 = arith.xori %6, %7 : i1
    %9 = arith.andi %8, %5 : i1
    %10 = arith.addi %4, %3 : i32
    %11 = arith.select %9, %10, %4 : i32
    %c0_i32_5 = arith.constant 0 : i32
    %c0_i32_6 = arith.constant 0 : i32
    return %11, %c0_i32_5 : i32, i32
  }
  func.func @transform_2(%arg0: i32) -> (i32, i32) {
    %c0_i32 = arith.constant 0 : i32
    %c0_i32_0 = arith.constant 0 : i32
    %c0_i32_1 = arith.constant 0 : i32
    return %c0_i32, %c0_i32_0 : i32, i32
  }
  func.func @transform_3(%arg0: i32) -> (i32, i32, i32) {
    %c0_i32 = arith.constant 0 : i32
    %c0_i32_0 = arith.constant 0 : i32
    %c0_i32_1 = arith.constant 0 : i32
    return %arg0, %c0_i32, %c0_i32_0 : i32, i32, i32
  }
}

</mosaic_0001>

<llo_original>
// kernel: tpu_custom_call.1
$region0: #{tpu_custom_call.1}
  #allocation0 [shape = 'u32[]', space=smem, size = 0x4, offset = 0x4, fixed_abs, tag = 'smem constant byte address 0x4 - core index']
  #allocation1 [shape = 'u32[144,128]{1,0:T(1,128)}', space=vmem, size = 0x12000, scoped, tag = 'internal scratch']
  %s0 = inlined_call_operand.hbm [shape: f32[32,64], index: 0, kind: input, shape index: {}]
  %s1 = inlined_call_operand.hbm [shape: f32[32,64], index: 1, kind: input, shape index: {}]
  %s2 = inlined_call_operand.hbm [shape: f32[256,512], index: 2, kind: input, shape index: {}]
  %s3 = inlined_call_operand.hbm [shape: f32[4,2,512], index: 3, kind: output, shape index: {}]
  %s4 = sld [smem:[#allocation0]]
  $region57: #{tpu_custom_call.1} parent=0
    _
  %s6 = ssub.s32 1, %s4
  %s7 = scalar_select 0, %s6, %s4
  $region1: #{tpu_custom_call.1} parent=0
    #allocation2 [shape = 'u8[8192]{0}', space=vmem, size = 0x2000, scoped, tag = 'input window, operand 0']
    #allocation3 [shape = 's32[2]{0}', space=sflag, size = 0x8, scoped, tag = 'scoped memory for tpu_custom_call.1']
    #allocation4 [shape = 's32[2]{0}', space=sflag, size = 0x8, scoped, tag = 'scoped memory for tpu_custom_call.1']
    #allocation5 [shape = 'u8[8192]{0}', space=vmem, size = 0x2000, scoped, tag = 'input window, operand 1']
    #allocation6 [shape = 's32[2]{0}', space=sflag, size = 0x8, scoped, tag = 'scoped memory for tpu_custom_call.1']
    #allocation7 [shape = 'u8[524288]{0}', space=vmem, size = 0x80000, scoped, tag = 'input window, operand 2, single buffered']
    #allocation8 [shape = 'u8[8192]{0}', space=vmem, size = 0x2000, scoped, tag = 'output window, operand 0']
    %8 = vsyncpa [#allocation3], 0
    %s9 = scalar_lea.sflag [#allocation3], 1
    %10 = vsyncpa %s9, 0
    %11 = vsyncpa [#allocation6], 0
    %s12 = scalar_lea.sflag [#allocation6], 1
    %13 = vsyncpa %s12, 0
    %14 = vsyncpa [#allocation4], 0
    %s15 = scalar_lea.sflag [#allocation4], 1
    %16 = vsyncpa %s15, 0
    loop: start=0, step=1, limit=6
    $region2: #{tpu_custom_call.1} parent=1 // loop_pre_header
      _
    $region3: #{tpu_custom_call.1} parent=1 // loop_header
      %s18 = sphi 0, %s22
      %p19 = scmp.ge.s32.totalorder %s18, 6
      %s28 = sphi 0, %s30
      %s31 = sphi 0, %s28
      %s32 = sphi 0, %s31
      %s48 = sphi 0, %s32
      %s80 = sphi 0, %s82
      %s83 = sphi 0, %s80
      %s84 = sphi 0, %s83
      %s100 = sphi 0, %s84
      %s104 = sphi 0, %s104
      %s106 = sphi 0, %s104
      %s107 = sphi 0, %s106
      %s121 = sphi 0, %s107
      %s127 = sphi 0, %s129
      %s130 = sphi 0, %s127
      %s131 = sphi 0, %s130
      %s147 = sphi 0, %s131
    $region4: #{tpu_custom_call.1} parent=1 // loop_header_branch
      %21 = sbr.rel (%p19) target = $region8
    $region5: #{tpu_custom_call.1} parent=1 // loop_body
      %s23 = ssub.s32 %s18, 1
      %s24 = ssub.s32 %s18, 2
      %s25 = sadd.s32 %s18, 1
      %s26 = ssub.s32 %s18, %s25
      %p27 = scmp.eq.s32.totalorder %s26, 0
      %s29 = sadd.s32 %s28, 1
      %s30 = scalar_select %p27, %s28, %s29
      %p33 = pneg %p27
      %p34 = scmp.eq.s32.totalorder %s18, 3
      %p35 = por %p33, %p34
      %p36 = scmp.ne.s32.totalorder %s28, %s31
      %p37 = scmp.eq.s32.totalorder %s18, 0
      %p38 = por %p36, %p37
      %p39 = scmp.ne.s32.totalorder %s28, %s31
      %p40 = scmp.eq.s32.totalorder %s23, 3
      %p41 = por %p39, %p40
      %p42 = scmp.ne.s32.totalorder %s31, %s32
      %p43 = scmp.eq.s32.totalorder %s23, 0
      %p44 = por %p42, %p43
      %p45 = scmp.ne.s32.totalorder %s31, %s32
      %p46 = scmp.eq.s32.totalorder %s24, 3
      %p47 = por %p45, %p46
      %p49 = scmp.ne.s32.totalorder %s32, %s48
      %p50 = scmp.eq.s32.totalorder %s24, 0
      %p51 = por %p49, %p50
      %s52 = sadd.s32 %s18, 1
      %p53 = scmp.lt.s32.totalorder %s52, 0
      %s54 = ssub.s32 0, %s52
      %s55 = scalar_select %p53, %s54, %s52
      %s56 = sand.u32 %s55, 3
      %s57 = ssub.s32 0, %s56
      %s58 = scalar_select %p53, %s57, %s56
      %p59 = scmp.ne.s32.totalorder %s58, 0
      %p60 = scmp.lt.s32.totalorder %s58, 0
      %p61 = pnand %p60, %p59
      %p62 = pneg %p61
      %s63 = sadd.s32 %s58, 4
      %s64 = scalar_select %p62, %s63, %s58
      %s65 = sadd.s32 %s25, 1
      %p66 = scmp.lt.s32.totalorder %s65, 0
      %s67 = ssub.s32 0, %s65
      %s68 = scalar_select %p66, %s67, %s65
      %s69 = sand.u32 %s68, 3
      %s70 = ssub.s32 0, %s69
      %s71 = scalar_select %p66, %s70, %s69
      %p72 = scmp.ne.s32.totalorder %s71, 0
      %p73 = scmp.lt.s32.totalorder %s71, 0
      %p74 = pnand %p73, %p72
      %p75 = pneg %p74
      %s76 = sadd.s32 %s71, 4
      %s77 = scalar_select %p75, %s76, %s71
      %s78 = ssub.s32 %s64, %s77
      %p79 = scmp.eq.s32.totalorder %s78, 0
      %s81 = sadd.s32 %s80, 1
      %s82 = scalar_select %p79, %s80, %s81
      %p85 = pneg %p79
      %p86 = scmp.eq.s32.totalorder %s18, 3
      %p87 = por %p85, %p86
      %p88 = scmp.ne.s32.totalorder %s80, %s83
      %p89 = scmp.eq.s32.totalorder %s18, 0
      %p90 = por %p88, %p89
      %p91 = scmp.ne.s32.totalorder %s80, %s83
      %p92 = scmp.eq.s32.totalorder %s23, 3
      %p93 = por %p91, %p92
      %p94 = scmp.ne.s32.totalorder %s83, %s84
      %p95 = scmp.eq.s32.totalorder %s23, 0
      %p96 = por %p94, %p95
      %p97 = scmp.ne.s32.totalorder %s83, %s84
      %p98 = scmp.eq.s32.totalorder %s24, 3
      %p99 = por %p97, %p98
      %p101 = scmp.ne.s32.totalorder %s84, %s100
      %p102 = scmp.eq.s32.totalorder %s24, 0
      %p103 = por %p101, %p102
      %s105 = sadd.s32 %s104, 1
      %p108 = scmp.eq.s32.totalorder %s18, 3
      %p109 = scmp.ne.s32.totalorder %s104, %s106
      %p110 = scmp.eq.s32.totalorder %s18, 0
      %p111 = por %p109, %p110
      %p112 = scmp.ne.s32.totalorder %s104, %s106
      %p113 = scmp.eq.s32.totalorder %s23, 3
      %p114 = por %p112, %p113
      %p115 = scmp.ne.s32.totalorder %s106, %s107
      %p116 = scmp.eq.s32.totalorder %s23, 0
      %p117 = por %p115, %p116
      %p118 = scmp.ne.s32.totalorder %s106, %s107
      %p119 = scmp.eq.s32.totalorder %s24, 3
      %p120 = por %p118, %p119
      %p122 = scmp.ne.s32.totalorder %s107, %s121
      %p123 = scmp.eq.s32.totalorder %s24, 0
      %p124 = por %p122, %p123
      %s125 = ssub.s32 %s18, %s25
      %p126 = scmp.eq.s32.totalorder %s125, 0
      %s128 = sadd.s32 %s127, 1
      %s129 = scalar_select %p126, %s127, %s128
      %p132 = pneg %p126
      %p133 = scmp.eq.s32.totalorder %s18, 3
      %p134 = por %p132, %p133
      %p135 = scmp.ne.s32.totalorder %s127, %s130
      %p136 = scmp.eq.s32.totalorder %s18, 0
      %p137 = por %p135, %p136
      %p138 = scmp.ne.s32.totalorder %s127, %s130
      %p139 = scmp.eq.s32.totalorder %s23, 3
      %p140 = por %p138, %p139
      %p141 = scmp.ne.s32.totalorder %s130, %s131
      %p142 = scmp.eq.s32.totalorder %s23, 0
      %p143 = por %p141, %p142
      %p144 = scmp.ne.s32.totalorder %s130, %s131
      %p145 = scmp.eq.s32.totalorder %s24, 3
      %p146 = por %p144, %p145
      %p148 = scmp.ne.s32.totalorder %s131, %s147
      %p149 = scmp.eq.s32.totalorder %s24, 0
      %p150 = por %p148, %p149
      %p151 = scmp.le.s32.totalorder 1, %s18
      %p152 = scmp.lt.s32.totalorder %s18, 5
      %p153 = pnand %p151, %p152
      %p154 = pneg %p153
      // Predicated region
      $region9: #{tpu_custom_call.1} parent=5 // pred_check
        _
      $region10: #{tpu_custom_call.1} parent=5 // pred_check_branch
        %156 = sbr.rel (%p153) target = $region12
      $region11: #{tpu_custom_call.1} parent=5 // pred_region
        %s157 = ssub.s32 %s18, 1
        // Predicated region
        $region13: #{tpu_custom_call.1} parent=11 // pred_check
          %p158 = pneg %p117
        $region14: #{tpu_custom_call.1} parent=11 // pred_check_branch
          %160 = sbr.rel (%p158) target = $region16
        $region15: #{tpu_custom_call.1} parent=11 // pred_region
          %s162 = ssub.s32 16384, 16384
          %163 = vsyncadd [#allocation6], %s162
          %s164 = sshll.u32 [#allocation7], 4
          %s165 = int_to_ptr.vmem [resolvable:$true] %s164
          %170 = dma.hbm_to_vmem [thread:$0]  %s2, 16384, %s165, [#allocation6], 512, 512, 32
        $region16: #{tpu_custom_call.1} parent=11 // pred_fallthru
          _
      $region12: #{tpu_custom_call.1} parent=5 // pred_fallthru
        _
      %p171 = scmp.lt.s32.totalorder %s18, 4
      // Predicated region
      $region17: #{tpu_custom_call.1} parent=5 // pred_check
        %p172 = pneg %p171
      $region18: #{tpu_custom_call.1} parent=5 // pred_check_branch
        %174 = sbr.rel (%p172) target = $region20
      $region19: #{tpu_custom_call.1} parent=5 // pred_region
        // Predicated region
        $region21: #{tpu_custom_call.1} parent=19 // pred_check
          %p175 = pneg %p38
        $region22: #{tpu_custom_call.1} parent=19 // pred_check_branch
          %177 = sbr.rel (%p175) target = $region24
        $region23: #{tpu_custom_call.1} parent=19 // pred_region
          %s178 = sand.u32 %s28, 1
          %s179 = scalar_lea.sflag [#allocation3], %s178
          %s180 = sand.u32 %s28, 1
          %s181 = smul.addr %s180, 8
          %s182 = scalar_lea.vmem [#allocation2], %s181
          %s184 = ssub.s32 128, 128
          %185 = vsyncadd %s179, %s184
          %s186 = smul.addr %s18, 128
          %s187 = scalar_lea.hbm %s0, %s186
          %s189 = sshll.u32 %s182, 4
          %s190 = int_to_ptr.vmem [resolvable:$true] %s189
          %192 = dma.hbm_to_vmem [thread:$0]  %s187, 128, %s190, %s179
        $region24: #{tpu_custom_call.1} parent=19 // pred_fallthru
          _
        // Predicated region
        $region25: #{tpu_custom_call.1} parent=19 // pred_check
          %p193 = pneg %p90
        $region26: #{tpu_custom_call.1} parent=19 // pred_check_branch
          %195 = sbr.rel (%p193) target = $region28
        $region27: #{tpu_custom_call.1} parent=19 // pred_region
          %s196 = sand.u32 %s18, 1
          %s197 = scalar_lea.sflag [#allocation6], %s196
          %s198 = sand.u32 %s80, 1
          %s199 = smul.addr %s198, 8
          %s200 = scalar_lea.vmem [#allocation5], %s199
          %s201 = sadd.s32 %s18, 1
          %p202 = scmp.lt.s32.totalorder %s201, 0
          %s203 = ssub.s32 0, %s201
          %s204 = scalar_select %p202, %s203, %s201
          %s205 = sand.u32 %s204, 3
          %s206 = ssub.s32 0, %s205
          %s207 = scalar_select %p202, %s206, %s205
          %p208 = scmp.ne.s32.totalorder %s207, 0
          %p209 = scmp.lt.s32.totalorder %s207, 0
          %p210 = pnand %p209, %p208
          %p211 = pneg %p210
          %s212 = sadd.s32 %s207, 4
          %s213 = scalar_select %p211, %s212, %s207
          %s215 = ssub.s32 128, 128
          %216 = vsyncadd %s197, %s215
          %s217 = smul.addr %s213, 128
          %s218 = scalar_lea.hbm %s1, %s217
          %s220 = sshll.u32 %s200, 4
          %s221 = int_to_ptr.vmem [resolvable:$true] %s220
          %223 = dma.hbm_to_vmem [thread:$0]  %s218, 128, %s221, %s197
        $region28: #{tpu_custom_call.1} parent=19 // pred_fallthru
          _
      $region20: #{tpu_custom_call.1} parent=5 // pred_fallthru
        _
      %p224 = scmp.le.s32.totalorder 1, %s18
      %p225 = scmp.lt.s32.totalorder %s18, 5
      %p226 = pnand %p224, %p225
      %p227 = pneg %p226
      // Predicated region
      $region29: #{tpu_custom_call.1} parent=5 // pred_check
        _
      $region30: #{tpu_custom_call.1} parent=5 // pred_check_branch
        %229 = sbr.rel (%p226) target = $region32
      $region31: #{tpu_custom_call.1} parent=5 // pred_region
        %s230 = ssub.s32 %s18, 1
        %s231 = sand.u32 %s31, 1
        %s232 = scalar_lea.sflag [#allocation3], %s231
        %s233 = sand.u32 %s31, 1
        %s234 = smul.addr %s233, 8
        %s235 = scalar_lea.vmem [#allocation2], %s234
        // Predicated region
        $region33: #{tpu_custom_call.1} parent=31 // pred_check
          %p236 = pneg %p44
        $region34: #{tpu_custom_call.1} parent=31 // pred_check_branch
          %238 = sbr.rel (%p236) target = $region36
        $region35: #{tpu_custom_call.1} parent=31 // pred_region
          %239 = dma.done %s232, 128
        $region36: #{tpu_custom_call.1} parent=31 // pred_fallthru
          _
        %s240 = sand.u32 %s23, 1
        %s241 = scalar_lea.sflag [#allocation6], %s240
        %s242 = sand.u32 %s83, 1
        %s243 = smul.addr %s242, 8
        %s244 = scalar_lea.vmem [#allocation5], %s243
        // Predicated region
        $region37: #{tpu_custom_call.1} parent=31 // pred_check
          %p245 = pneg %p96
        $region38: #{tpu_custom_call.1} parent=31 // pred_check_branch
          %247 = sbr.rel (%p245) target = $region40
        $region39: #{tpu_custom_call.1} parent=31 // pred_region
          %248 = dma.done %s241, 128
        $region40: #{tpu_custom_call.1} parent=31 // pred_fallthru
          _
        // Predicated region
        $region41: #{tpu_custom_call.1} parent=31 // pred_check
          %p249 = pneg %p117
        $region42: #{tpu_custom_call.1} parent=31 // pred_check_branch
          %251 = sbr.rel (%p249) target = $region44
        $region43: #{tpu_custom_call.1} parent=31 // pred_region
          %252 = dma.done [#allocation6], 16384
        $region44: #{tpu_custom_call.1} parent=31 // pred_fallthru
          _
        %s253 = sand.u32 %s31, 1
        %s254 = scalar_lea.sflag [#allocation3], %s253
        %s255 = sand.u32 %s31, 1
        %s256 = smul.addr %s255, 8
        %s257 = scalar_lea.vmem [#allocation2], %s256
        %p258 = pneg %p44
        %p259 = pneg %p41
        %s260 = sand.u32 %s23, 1
        %s261 = scalar_lea.sflag [#allocation6], %s260
        %s262 = sand.u32 %s83, 1
        %s263 = smul.addr %s262, 8
        %s264 = scalar_lea.vmem [#allocation5], %s263
        %p265 = pneg %p96
        %p266 = pneg %p93
        %p267 = pneg %p117
        %p268 = pneg %p114
        %p269 = pneg %p143
        %p270 = pneg %p140
        %s271 = sand.u32 %s130, 1
        %s272 = scalar_lea.sflag [#allocation4], %s271
        %s273 = sand.u32 %s130, 1
        %s274 = smul.addr %s273, 8
        %s275 = scalar_lea.vmem [#allocation8], %s274
        %s276 = sadd.s32 %s23, 1
        %p277 = scmp.lt.s32.totalorder %s276, 0
        %s278 = ssub.s32 0, %s276
        %s279 = scalar_select %p277, %s278, %s276
        %s280 = sand.u32 %s279, 3
        %s281 = ssub.s32 0, %s280
        %s282 = scalar_select %p277, %s281, %s280
        %p283 = scmp.ne.s32.totalorder %s282, 0
        %p284 = scmp.lt.s32.totalorder %s282, 0
        %p285 = pnand %p284, %p283
        %p286 = pneg %p285
        %s287 = sadd.s32 %s282, 4
        %s288 = scalar_select %p286, %s287, %s282
        %v289 = vld [vmem:[%s235] sm:$0xff]
        %v290 = vld [vmem:[%s244] sm:$0x1]
        %v292 = vrot.slane %v289, 1
        %v295 = vrot.slane %v290, 1
        %vm297 = vcmask 1046528
        %v298 = vsel %vm297, %v292, %v295
        %s299 = smul.u32 %s23, 8
        %v300 = vlaneseq
        %v301 = vshrl.u32 %v300, 7
        %v302 = vstv %s299
        %v303 = vadd.s32 %v302, %v301
        %vm304 = vcmp.lt.s32.totalorder %v303, 0
        %v305 = vsub.s32 0, %v303
        %v306 = vsel %vm304, %v305, %v303
        %v307 = vshrl.u32 %v306, 4
        %v308 = vand.u32 %v306, 15
        %v309 = vsub.s32 0, %v308
        %v310 = vsel %vm304, %v309, %v308
        %vm311 = vcmp.ne.s32.totalorder %v310, 0
        %vm312 = vcmp.lt.s32.totalorder %v310, 0
        %vm313 = vmand %vm312, %vm311
        %v314 = vadd.s32 %v310, 16
        %v315 = vsel %vm313, %v314, %v310
        %vm316 = vcmp.ne.s32.totalorder %v315, 15
        %v317 = vsel %vm316, 1, 0
        %vm318 = vcmp.eq.s32.totalorder %v317, 1
        %v319 = vsel %vm318, %v298, 0.0
        %320 = vrot.lane.b32.xlu0 %v289, 124
        %v321 = vpop.permute.xlu0 %320
        %vm323 = vcmask 490496
        %v324 = vsel %vm323, %v321, 0.0
        %326 = vrot.lane.b32.xlu0 %v319, 124
        %v327 = vpop.permute.xlu0 %326
        %v329 = vsel %vm323, %v327, 0.0
        %331 = vrot.lane.b32.xlu0 %v324, 64
        %v332 = vpop.permute.xlu0 %331
        %335 = vrot.lane.b32.xlu0 %v329, 64
        %v336 = vpop.permute.xlu0 %335
        %vm338 = vcmask 523264
        %v339 = vsel %vm338, %v289, %v332
        %v340 = vsel %vm338, %v319, %v336
        %v341 = vld [vmem:[#allocation7] sm:$0xff]
        %v342 = vld [vmem:[#allocation7 + $0x8] sm:$0xff]
        %v343 = vld [vmem:[#allocation7 + $0x10] sm:$0xff]
        %v344 = vld [vmem:[#allocation7 + $0x18] sm:$0xff]
        %v345 = vld [vmem:[#allocation7 + $0x20] sm:$0xff]
        %v346 = vld [vmem:[#allocation7 + $0x28] sm:$0xff]
        %v347 = vld [vmem:[#allocation7 + $0x30] sm:$0xff]
        %v348 = vld [vmem:[#allocation7 + $0x38] sm:$0xff]
        %v349 = vld [vmem:[#allocation7 + $0x40] sm:$0xff]
        %v350 = vld [vmem:[#allocation7 + $0x48] sm:$0xff]
        %v351 = vld [vmem:[#allocation7 + $0x50] sm:$0xff]
        %v352 = vld [vmem:[#allocation7 + $0x58] sm:$0xff]
        %v353 = vld [vmem:[#allocation7 + $0x60] sm:$0xff]
        %v354 = vld [vmem:[#allocation7 + $0x68] sm:$0xff]
        %v355 = vld [vmem:[#allocation7 + $0x70] sm:$0xff]
        %v356 = vld [vmem:[#allocation7 + $0x78] sm:$0xff]
        %v357 = vld [vmem:[#allocation7 + $0x80] sm:$0xff]
        %v358 = vld [vmem:[#allocation7 + $0x88] sm:$0xff]
        %v359 = vld [vmem:[#allocation7 + $0x90] sm:$0xff]
        %v360 = vld [vmem:[#allocation7 + $0x98] sm:$0xff]
        %v361 = vld [vmem:[#allocation7 + $0xa0] sm:$0xff]
        %v362 = vld [vmem:[#allocation7 + $0xa8] sm:$0xff]
        %v363 = vld [vmem:[#allocation7 + $0xb0] sm:$0xff]
        %v364 = vld [vmem:[#allocation7 + $0xb8] sm:$0xff]
        %v365 = vld [vmem:[#allocation7 + $0xc0] sm:$0xff]
        %v366 = vld [vmem:[#allocation7 + $0xc8] sm:$0xff]
        %v367 = vld [vmem:[#allocation7 + $0xd0] sm:$0xff]
        %v368 = vld [vmem:[#allocation7 + $0xd8] sm:$0xff]
        %v369 = vld [vmem:[#allocation7 + $0xe0] sm:$0xff]
        %v370 = vld [vmem:[#allocation7 + $0xe8] sm:$0xff]
        %v371 = vld [vmem:[#allocation7 + $0xf0] sm:$0xff]
        %v372 = vld [vmem:[#allocation7 + $0xf8] sm:$0xff]
        %v373 = vld [vmem:[#allocation7 + $0x100] sm:$0xff]
        %v374 = vld [vmem:[#allocation7 + $0x108] sm:$0xff]
        %v375 = vld [vmem:[#allocation7 + $0x110] sm:$0xff]
        %v376 = vld [vmem:[#allocation7 + $0x118] sm:$0xff]
        %v377 = vld [vmem:[#allocation7 + $0x120] sm:$0xff]
        %v378 = vld [vmem:[#allocation7 + $0x128] sm:$0xff]
        %v379 = vld [vmem:[#allocation7 + $0x130] sm:$0xff]
        %v380 = vld [vmem:[#allocation7 + $0x138] sm:$0xff]
        %v381 = vld [vmem:[#allocation7 + $0x140] sm:$0xff]
        %v382 = vld [vmem:[#allocation7 + $0x148] sm:$0xff]
        %v383 = vld [vmem:[#allocation7 + $0x150] sm:$0xff]
        %v384 = vld [vmem:[#allocation7 + $0x158] sm:$0xff]
        %v385 = vld [vmem:[#allocation7 + $0x160] sm:$0xff]
        %v386 = vld [vmem:[#allocation7 + $0x168] sm:$0xff]
        %v387 = vld [vmem:[#allocation7 + $0x170] sm:$0xff]
        %v388 = vld [vmem:[#allocation7 + $0x178] sm:$0xff]
        %v389 = vld [vmem:[#allocation7 + $0x180] sm:$0xff]
        %v390 = vld [vmem:[#allocation7 + $0x188] sm:$0xff]
        %v391 = vld [vmem:[#allocation7 + $0x190] sm:$0xff]
        %v392 = vld [vmem:[#allocation7 + $0x198] sm:$0xff]
        %v393 = vld [vmem:[#allocation7 + $0x1a0] sm:$0xff]
        %v394 = vld [vmem:[#allocation7 + $0x1a8] sm:$0xff]
        %v395 = vld [vmem:[#allocation7 + $0x1b0] sm:$0xff]
        %v396 = vld [vmem:[#allocation7 + $0x1b8] sm:$0xff]
        %v397 = vld [vmem:[#allocation7 + $0x1c0] sm:$0xff]
        %v398 = vld [vmem:[#allocation7 + $0x1c8] sm:$0xff]
        %v399 = vld [vmem:[#allocation7 + $0x1d0] sm:$0xff]
        %v400 = vld [vmem:[#allocation7 + $0x1d8] sm:$0xff]
        %v401 = vld [vmem:[#allocation7 + $0x1e0] sm:$0xff]
        %v402 = vld [vmem:[#allocation7 + $0x1e8] sm:$0xff]
        %v403 = vld [vmem:[#allocation7 + $0x1f0] sm:$0xff]
        %v404 = vld [vmem:[#allocation7 + $0x1f8] sm:$0xff]
        %v405 = vld [vmem:[#allocation7 + $0x200] sm:$0xff]
        %v406 = vld [vmem:[#allocation7 + $0x208] sm:$0xff]
        %v407 = vld [vmem:[#allocation7 + $0x210] sm:$0xff]
        %v408 = vld [vmem:[#allocation7 + $0x218] sm:$0xff]
        %v409 = vld [vmem:[#allocation7 + $0x220] sm:$0xff]
        %v410 = vld [vmem:[#allocation7 + $0x228] sm:$0xff]
        %v411 = vld [vmem:[#allocation7 + $0x230] sm:$0xff]
        %v412 = vld [vmem:[#allocation7 + $0x238] sm:$0xff]
        %v413 = vld [vmem:[#allocation7 + $0x240] sm:$0xff]
        %v414 = vld [vmem:[#allocation7 + $0x248] sm:$0xff]
        %v415 = vld [vmem:[#allocation7 + $0x250] sm:$0xff]
        %v416 = vld [vmem:[#allocation7 + $0x258] sm:$0xff]
        %v417 = vld [vmem:[#allocation7 + $0x260] sm:$0xff]
        %v418 = vld [vmem:[#allocation7 + $0x268] sm:$0xff]
        %v419 = vld [vmem:[#allocation7 + $0x270] sm:$0xff]
        %v420 = vld [vmem:[#allocation7 + $0x278] sm:$0xff]
        %v421 = vld [vmem:[#allocation7 + $0x280] sm:$0xff]
        %v422 = vld [vmem:[#allocation7 + $0x288] sm:$0xff]
        %v423 = vld [vmem:[#allocation7 + $0x290] sm:$0xff]
        %v424 = vld [vmem:[#allocation7 + $0x298] sm:$0xff]
        %v425 = vld [vmem:[#allocation7 + $0x2a0] sm:$0xff]
        %v426 = vld [vmem:[#allocation7 + $0x2a8] sm:$0xff]
        %v427 = vld [vmem:[#allocation7 + $0x2b0] sm:$0xff]
        %v428 = vld [vmem:[#allocation7 + $0x2b8] sm:$0xff]
        %v429 = vld [vmem:[#allocation7 + $0x2c0] sm:$0xff]
        %v430 = vld [vmem:[#allocation7 + $0x2c8] sm:$0xff]
        %v431 = vld [vmem:[#allocation7 + $0x2d0] sm:$0xff]
        %v432 = vld [vmem:[#allocation7 + $0x2d8] sm:$0xff]
        %v433 = vld [vmem:[#allocation7 + $0x2e0] sm:$0xff]
        %v434 = vld [vmem:[#allocation7 + $0x2e8] sm:$0xff]
        %v435 = vld [vmem:[#allocation7 + $0x2f0] sm:$0xff]
        %v436 = vld [vmem:[#allocation7 + $0x2f8] sm:$0xff]
        %v437 = vld [vmem:[#allocation7 + $0x300] sm:$0xff]
        %v438 = vld [vmem:[#allocation7 + $0x308] sm:$0xff]
        %v439 = vld [vmem:[#allocation7 + $0x310] sm:$0xff]
        %v440 = vld [vmem:[#allocation7 + $0x318] sm:$0xff]
        %v441 = vld [vmem:[#allocation7 + $0x320] sm:$0xff]
        %v442 = vld [vmem:[#allocation7 + $0x328] sm:$0xff]
        %v443 = vld [vmem:[#allocation7 + $0x330] sm:$0xff]
        %v444 = vld [vmem:[#allocation7 + $0x338] sm:$0xff]
        %v445 = vld [vmem:[#allocation7 + $0x340] sm:$0xff]
        %v446 = vld [vmem:[#allocation7 + $0x348] sm:$0xff]
        %v447 = vld [vmem:[#allocation7 + $0x350] sm:$0xff]
        %v448 = vld [vmem:[#allocation7 + $0x358] sm:$0xff]
        %v449 = vld [vmem:[#allocation7 + $0x360] sm:$0xff]
        %v450 = vld [vmem:[#allocation7 + $0x368] sm:$0xff]
        %v451 = vld [vmem:[#allocation7 + $0x370] sm:$0xff]
        %v452 = vld [vmem:[#allocation7 + $0x378] sm:$0xff]
        %v453 = vld [vmem:[#allocation7 + $0x380] sm:$0xff]
        %v454 = vld [vmem:[#allocation7 + $0x388] sm:$0xff]
        %v455 = vld [vmem:[#allocation7 + $0x390] sm:$0xff]
        %v456 = vld [vmem:[#allocation7 + $0x398] sm:$0xff]
        %v457 = vld [vmem:[#allocation7 + $0x3a0] sm:$0xff]
        %v458 = vld [vmem:[#allocation7 + $0x3a8] sm:$0xff]
        %v459 = vld [vmem:[#allocation7 + $0x3b0] sm:$0xff]
        %v460 = vld [vmem:[#allocation7 + $0x3b8] sm:$0xff]
        %v461 = vld [vmem:[#allocation7 + $0x3c0] sm:$0xff]
        %v462 = vld [vmem:[#allocation7 + $0x3c8] sm:$0xff]
        %v463 = vld [vmem:[#allocation7 + $0x3d0] sm:$0xff]
        %v464 = vld [vmem:[#allocation7 + $0x3d8] sm:$0xff]
        %v465 = vld [vmem:[#allocation7 + $0x3e0] sm:$0xff]
        %v466 = vld [vmem:[#allocation7 + $0x3e8] sm:$0xff]
        %v467 = vld [vmem:[#allocation7 + $0x3f0] sm:$0xff]
        %v468 = vld [vmem:[#allocation7 + $0x3f8] sm:$0xff]
        %469 = vmatprep.subr.mxu0 %v402
        %470 = vmatpush1.msra.mxu0 %v401
        %471 = vmatprep.subr.mxu0 %v398
        %472 = vmatpush1.msra.mxu0 %v397
        %473 = vmatprep.subr.mxu0 %v394
        %474 = vmatpush1.msra.mxu0 %v393
        %475 = vmatprep.subr.mxu0 %v390
        %476 = vmatpush1.msra.mxu0 %v389
        %477 = vmatprep.subr.mxu0 %v386
        %478 = vmatpush1.msra.mxu0 %v385
        %479 = vmatprep.subr.mxu0 %v382
        %480 = vmatpush1.msra.mxu0 %v381
        %481 = vmatprep.subr.mxu0 %v378
        %482 = vmatpush1.msra.mxu0 %v377
        %483 = vmatprep.subr.mxu0 %v374
        %484 = vmatpush1.msra.mxu0 %v373
        %485 = vmatprep.subr.mxu0 %v370
        %486 = vmatpush1.msra.mxu0 %v369
        %487 = vmatprep.subr.mxu0 %v366
        %488 = vmatpush1.msra.mxu0 %v365
        %489 = vmatprep.subr.mxu0 %v362
        %490 = vmatpush1.msra.mxu0 %v361
        %491 = vmatprep.subr.mxu0 %v358
        %492 = vmatpush1.msra.mxu0 %v357
        %493 = vmatprep.subr.mxu0 %v354
        %494 = vmatpush1.msra.mxu0 %v353
        %495 = vmatprep.subr.mxu0 %v350
        %496 = vmatpush1.msra.mxu0 %v349
        %497 = vmatprep.subr.mxu0 %v346
        %498 = vmatpush1.msra.mxu0 %v345
        %499 = vmatprep.subr.mxu0 %v342
        %500 = vmatpush1.msra.mxu0 %v341
        %501 = vmatprep.subr.mxu0 %v466
        %502 = vmatpush2.msra.mxu0 %v465
        %503 = vmatprep.subr.mxu0 %v462
        %504 = vmatpush2.msra.mxu0 %v461
        %505 = vmatprep.subr.mxu0 %v458
        %506 = vmatpush2.msra.mxu0 %v457
        %507 = vmatprep.subr.mxu0 %v454
        %508 = vmatpush2.msra.mxu0 %v453
        %509 = vmatprep.subr.mxu0 %v450
        %510 = vmatpush2.msra.mxu0 %v449
        %511 = vmatprep.subr.mxu0 %v446
        %512 = vmatpush2.msra.mxu0 %v445
        %513 = vmatprep.subr.mxu0 %v442
        %514 = vmatpush2.msra.mxu0 %v441
        %515 = vmatprep.subr.mxu0 %v438
        %516 = vmatpush2.msra.mxu0 %v437
        %517 = vmatprep.subr.mxu0 %v434
        %518 = vmatpush2.msra.mxu0 %v433
        %519 = vmatprep.subr.mxu0 %v430
        %520 = vmatpush2.msra.mxu0 %v429
        %521 = vmatprep.subr.mxu0 %v426
        %522 = vmatpush2.msra.mxu0 %v425
        %523 = vmatprep.subr.mxu0 %v422
        %524 = vmatpush2.msra.mxu0 %v421
        %525 = vmatprep.subr.mxu0 %v418
        %526 = vmatpush2.msra.mxu0 %v417
        %527 = vmatprep.subr.mxu0 %v414
        %528 = vmatpush2.msra.mxu0 %v413
        %529 = vmatprep.subr.mxu0 %v410
        %530 = vmatpush2.msra.mxu0 %v409
        %531 = vmatprep.subr.mxu0 %v406
        %532 = vmatpush2.msra.mxu0 %v405
        %533 = vmatprep.mubr.f32.mxu0 %v340
        %534 = vmatmul.mubr.f32.gmra.mxu0 %v339
        %v535 = vpop.f32.mrf.mxu0
        %v536 = vadd.f32 0.0, %v535
        %v537 = vpop.f32.mrf.mxu0
        %v538 = vadd.f32 0.0, %v537
        %539 = vdwg.mxu0
        %540 = vmatprep.subr.mxu0 %v404
        %541 = vmatpush1.msra.mxu0 %v403
        %542 = vmatprep.subr.mxu0 %v400
        %543 = vmatpush1.msra.mxu0 %v399
        %544 = vmatprep.subr.mxu0 %v396
        %545 = vmatpush1.msra.mxu0 %v395
        %546 = vmatprep.subr.mxu0 %v392
        %547 = vmatpush1.msra.mxu0 %v391
        %548 = vmatprep.subr.mxu0 %v388
        %549 = vmatpush1.msra.mxu0 %v387
        %550 = vmatprep.subr.mxu0 %v384
        %551 = vmatpush1.msra.mxu0 %v383
        %552 = vmatprep.subr.mxu0 %v380
        %553 = vmatpush1.msra.mxu0 %v379
        %554 = vmatprep.subr.mxu0 %v376
        %555 = vmatpush1.msra.mxu0 %v375
        %556 = vmatprep.subr.mxu0 %v372
        %557 = vmatpush1.msra.mxu0 %v371
        %558 = vmatprep.subr.mxu0 %v368
        %559 = vmatpush1.msra.mxu0 %v367
        %560 = vmatprep.subr.mxu0 %v364
        %561 = vmatpush1.msra.mxu0 %v363
        %562 = vmatprep.subr.mxu0 %v360
        %563 = vmatpush1.msra.mxu0 %v359
        %564 = vmatprep.subr.mxu0 %v356
        %565 = vmatpush1.msra.mxu0 %v355
        %566 = vmatprep.subr.mxu0 %v352
        %567 = vmatpush1.msra.mxu0 %v351
        %568 = vmatprep.subr.mxu0 %v348
        %569 = vmatpush1.msra.mxu0 %v347
        %570 = vmatprep.subr.mxu0 %v344
        %571 = vmatpush1.msra.mxu0 %v343
        %572 = vmatprep.subr.mxu0 %v468
        %573 = vmatpush2.msra.mxu0 %v467
        %574 = vmatprep.subr.mxu0 %v464
        %575 = vmatpush2.msra.mxu0 %v463
        %576 = vmatprep.subr.mxu0 %v460
        %577 = vmatpush2.msra.mxu0 %v459
        %578 = vmatprep.subr.mxu0 %v456
        %579 = vmatpush2.msra.mxu0 %v455
        %580 = vmatprep.subr.mxu0 %v452
        %581 = vmatpush2.msra.mxu0 %v451
        %582 = vmatprep.subr.mxu0 %v448
        %583 = vmatpush2.msra.mxu0 %v447
        %584 = vmatprep.subr.mxu0 %v444
        %585 = vmatpush2.msra.mxu0 %v443
        %586 = vmatprep.subr.mxu0 %v440
        %587 = vmatpush2.msra.mxu0 %v439
        %588 = vmatprep.subr.mxu0 %v436
        %589 = vmatpush2.msra.mxu0 %v435
        %590 = vmatprep.subr.mxu0 %v432
        %591 = vmatpush2.msra.mxu0 %v431
        %592 = vmatprep.subr.mxu0 %v428
        %593 = vmatpush2.msra.mxu0 %v427
        %594 = vmatprep.subr.mxu0 %v424
        %595 = vmatpush2.msra.mxu0 %v423
        %596 = vmatprep.subr.mxu0 %v420
        %597 = vmatpush2.msra.mxu0 %v419
        %598 = vmatprep.subr.mxu0 %v416
        %599 = vmatpush2.msra.mxu0 %v415
        %600 = vmatprep.subr.mxu0 %v412
        %601 = vmatpush2.msra.mxu0 %v411
        %602 = vmatprep.subr.mxu0 %v408
        %603 = vmatpush2.msra.mxu0 %v407
        %604 = vmatprep.mubr.f32.mxu0 %v340
        %605 = vmatmul.mubr.f32.gmra.mxu0 %v339
        %v606 = vpop.f32.mrf.mxu0
        %v607 = vadd.f32 0.0, %v606
        %v608 = vpop.f32.mrf.mxu0
        %v609 = vadd.f32 0.0, %v608
        %610 = vdwg.mxu0
        %v611 = vrot.slane %v536, 4
        %v612 = vadd.f32 %v536, %v611
        %v613 = vrot.slane %v612, 2
        %v614 = vadd.f32 %v612, %v613
        %v615 = vrot.slane %v614, 1
        %v616 = vadd.f32 %v614, %v615
        %v617 = vrot.slane %v538, 4
        %v618 = vadd.f32 %v538, %v617
        %v619 = vrot.slane %v618, 2
        %v620 = vadd.f32 %v618, %v619
        %v621 = vrot.slane %v620, 1
        %v622 = vadd.f32 %v620, %v621
        %v623 = vrot.slane %v607, 4
        %v624 = vadd.f32 %v607, %v623
        %v625 = vrot.slane %v624, 2
        %v626 = vadd.f32 %v624, %v625
        %v627 = vrot.slane %v626, 1
        %v628 = vadd.f32 %v626, %v627
        %v629 = vrot.slane %v609, 4
        %v630 = vadd.f32 %v609, %v629
        %v631 = vrot.slane %v630, 2
        %v632 = vadd.f32 %v630, %v631
        %v633 = vrot.slane %v632, 1
        %v634 = vadd.f32 %v632, %v633
        %v635 = vmul.f32 %v616, 0.125
        %v636 = vmul.f32 %v622, 0.125
        %v637 = vmul.f32 %v628, 0.125
        %v638 = vmul.f32 %v634, 0.125
        %v639 = vsub.f32 %v536, %v635
        %v640 = vsub.f32 %v538, %v636
        %v641 = vsub.f32 %v607, %v637
        %v642 = vsub.f32 %v609, %v638
        %v647 = vcombine.low %v635, %v636
        %v648 = vcombine.low %v637, %v638
        %v650 = vunpack.c.l.s4 1966171168
        %v651 = vunpack.c.0.s8 %v650
        %v652 = vlaneseq
        %v653 = vshrl.u32 %v652, 7
        %v654 = vsub.s32 %v651, %v653
        %v655 = vrot.slane %v647, %v654
        %v657 = vunpack.c.l.s4 1966171168
        %v658 = vunpack.c.0.s8 %v657
        %v659 = vlaneseq
        %v660 = vshrl.u32 %v659, 7
        %v661 = vsub.s32 %v658, %v660
        %v662 = vrot.slane %v648, %v661
        %v663 = vcombine.low %v655, %v662
        %v665 = vunpack.c.l.s4 1966171168
        %v666 = vunpack.c.0.s8 %v665
        %v667 = vlaneseq
        %v668 = vshrl.u32 %v667, 7
        %v669 = vsub.s32 %v666, %v668
        %v670 = vrot.slane %v663, %v669
        %v672 = vlaneseq
        %vm673 = vcmp.ge.s32.totalorder %v672, 0
        %vm674 = vcmp.lt.s32.totalorder %v672, 512
        %vm675 = vmand %vm673, %vm674
        %676 = vst.msk [vmem:[%s275] ss:$2 sm:$0xf] %vm675, %v670
        %v677 = vmul.f32 %v639, %v639
        %v678 = vmul.f32 %v640, %v640
        %v679 = vmul.f32 %v641, %v641
        %v680 = vmul.f32 %v642, %v642
        %v681 = vrot.slane %v677, 4
        %v682 = vadd.f32 %v677, %v681
        %v683 = vrot.slane %v682, 2
        %v684 = vadd.f32 %v682, %v683
        %v685 = vrot.slane %v684, 1
        %v686 = vadd.f32 %v684, %v685
        %v687 = vrot.slane %v678, 4
        %v688 = vadd.f32 %v678, %v687
        %v689 = vrot.slane %v688, 2
        %v690 = vadd.f32 %v688, %v689
        %v691 = vrot.slane %v690, 1
        %v692 = vadd.f32 %v690, %v691
        %v693 = vrot.slane %v679, 4
        %v694 = vadd.f32 %v679, %v693
        %v695 = vrot.slane %v694, 2
        %v696 = vadd.f32 %v694, %v695
        %v697 = vrot.slane %v696, 1
        %v698 = vadd.f32 %v696, %v697
        %v699 = vrot.slane %v680, 4
        %v700 = vadd.f32 %v680, %v699
        %v701 = vrot.slane %v700, 2
        %v702 = vadd.f32 %v700, %v701
        %v703 = vrot.slane %v702, 1
        %v704 = vadd.f32 %v702, %v703
        %v709 = vcombine.low %v686, %v692
        %v710 = vcombine.low %v698, %v704
        %v712 = vunpack.c.l.s4 1966171168
        %v713 = vunpack.c.0.s8 %v712
        %v714 = vlaneseq
        %v715 = vshrl.u32 %v714, 7
        %v716 = vsub.s32 %v713, %v715
        %v717 = vrot.slane %v709, %v716
        %v719 = vunpack.c.l.s4 1966171168
        %v720 = vunpack.c.0.s8 %v719
        %v721 = vlaneseq
        %v722 = vshrl.u32 %v721, 7
        %v723 = vsub.s32 %v720, %v722
        %v724 = vrot.slane %v710, %v723
        %v725 = vcombine.low %v717, %v724
        %v727 = vunpack.c.l.s4 1966171168
        %v728 = vunpack.c.0.s8 %v727
        %v729 = vlaneseq
        %v730 = vshrl.u32 %v729, 7
        %v731 = vsub.s32 %v728, %v730
        %v732 = vrot.slane %v725, %v731
        %s734 = scalar_lea.vmem %s275, 1 [#allocation8]
        %735 = vst.msk [vmem:[%s734] ss:$2 sm:$0xf] %vm675, %v732
        %s736 = sand.u32 %s130, 1
        %s737 = scalar_lea.sflag [#allocation4], %s736
        %s738 = sand.u32 %s130, 1
        %s739 = smul.addr %s738, 8
        %s740 = scalar_lea.vmem [#allocation8], %s739
        // Predicated region
        $region45: #{tpu_custom_call.1} parent=31 // pred_check
          %p741 = pneg %p140
        $region46: #{tpu_custom_call.1} parent=31 // pred_check_branch
          %743 = sbr.rel (%p741) target = $region48
        $region47: #{tpu_custom_call.1} parent=31 // pred_region
          %s745 = ssub.s32 128, 128
          %746 = vsyncadd %s737, %s745
          %s747 = smul.addr %s23, 4
          %s748 = smul.addr %s747, 32
          %s749 = scalar_lea.hbm %s3, %s748
          %s751 = sshll.u32 %s740, 4
          %s752 = int_to_ptr.vmem [resolvable:$true] %s751
          %754 = dma.vmem_to_hbm [thread:$0]  %s752, 128, %s749, %s737
        $region48: #{tpu_custom_call.1} parent=31 // pred_fallthru
          _
      $region32: #{tpu_custom_call.1} parent=5 // pred_fallthru
        _
      %p755 = scmp.le.s32.totalorder 2, %s18
      // Predicated region
      $region49: #{tpu_custom_call.1} parent=5 // pred_check
        %p756 = pneg %p755
      $region50: #{tpu_custom_call.1} parent=5 // pred_check_branch
        %758 = sbr.rel (%p756) target = $region52
      $region51: #{tpu_custom_call.1} parent=5 // pred_region
        %s759 = ssub.s32 %s18, 2
        // Predicated region
        $region53: #{tpu_custom_call.1} parent=51 // pred_check
          %p760 = pneg %p146
        $region54: #{tpu_custom_call.1} parent=51 // pred_check_branch
          %762 = sbr.rel (%p760) target = $region56
        $region55: #{tpu_custom_call.1} parent=51 // pred_region
          %s763 = sand.u32 %s131, 1
          %s764 = scalar_lea.sflag [#allocation4], %s763
          %s765 = sand.u32 %s131, 1
          %s766 = smul.addr %s765, 8
          %s767 = scalar_lea.vmem [#allocation8], %s766
          %768 = dma.done %s764, 128
        $region56: #{tpu_custom_call.1} parent=51 // pred_fallthru
          _
      $region52: #{tpu_custom_call.1} parent=5 // pred_fallthru
        _
    $region6: #{tpu_custom_call.1} parent=1 // loop_footer
      %s22 = sadd.s32 1, %s18
    $region7: #{tpu_custom_call.1} parent=1 // loop_footer_branch
      %17 = sbr.rel target = $region3
    $region8: #{tpu_custom_call.1} parent=1 // loop_exit
      _
    %769 = vsyncpa [#allocation3], 1
    %s770 = scalar_lea.sflag [#allocation3], 1
    %771 = vsyncpa %s770, 1
    %772 = vsyncpa [#allocation6], 1
    %s773 = scalar_lea.sflag [#allocation6], 1
    %774 = vsyncpa %s773, 1
    %775 = vsyncpa [#allocation4], 1
    %s776 = scalar_lea.sflag [#allocation4], 1
    %777 = vsyncpa %s776, 1

</llo_original>
